<compile_context>
chip_gen: v6e
topology: v6e:2x2x1
jax: 0.10.0
libtpu: 0.0.40
codegen_flags: <defaults>
</compile_context>

<pallas_src>
import functools

import jax
import jax.numpy as jnp
from jax.experimental import pallas as pl
from jax.experimental.pallas import tpu as pltpu

HIDDEN = 64


def _lstm_fc_kernel(x_ref, w_ih_t_ref, w_hh_t_ref, b_ref, w_fc_t_ref, b_fc_ref,
                    out_ref, gates_scr, *, T, B, H):
    """Single-layer LSTM recurrence + final Linear on the last hidden state.

    Gate column order is pre-permuted in the wrapper to [i, f, o, g] so the three
    sigmoid gates form one contiguous block (single full-width sigmoid, fewer
    lane slices on the serial critical path).

    x_ref:      (T*B, F)   time-major, flattened input (rows t*B:(t+1)*B = step t)
    w_ih_t_ref: (F, 4H)    input->gates weight, pre-transposed, gate order [i,f,o,g]
    w_hh_t_ref: (H, 4H)    hidden->gates weight, pre-transposed, gate order [i,f,o,g]
    b_ref:      (1, 4H)    b_ih + b_hh combined, gate order [i,f,o,g]
    w_fc_t_ref: (H, F)     fc weight, pre-transposed
    b_fc_ref:   (1, F)     fc bias
    out_ref:    (B, F)     fc(h_T)
    gates_scr:  (T*B, 4H)  hoisted input-projection results (VMEM scratch)
    """
    # ---- Hoisted input projection: ONE (T*B, F) @ (F, 4H) matmul, entirely off
    # the serial h-dependence chain.  Per-step loads below do not depend on h,
    # so the scheduler can issue them early.
    gates_scr[...] = (
        jnp.dot(x_ref[...], w_ih_t_ref[...], preferred_element_type=jnp.float32)
        + b_ref[...]
    )

    w_hh_t = w_hh_t_ref[...]                      # (H, 4H), kept resident in vregs

    # ---- Serial recurrence. T is static & tiny -> fully unrolled so the LLO
    # scheduler sees across steps; h/c carried as values (no VMEM round-trips).
    h = jnp.zeros((B, H), jnp.float32)
    c = jnp.zeros((B, H), jnp.float32)
    for t in range(T):
        gates = gates_scr[pl.ds(t * B, B), :] + jnp.dot(
            h, w_hh_t, preferred_element_type=jnp.float32)     # (B, 4H)
        sig = jax.nn.sigmoid(gates)               # one full-width sigmoid (EUP)
        i_g = sig[:, 0 * H:1 * H]
        f_g = sig[:, 1 * H:2 * H]
        o_g = sig[:, 2 * H:3 * H]
        g_g = jnp.tanh(gates[:, 3 * H:4 * H])
        c = f_g * c + i_g * g_g
        h = o_g * jnp.tanh(c)

    # ---- fc on the final hidden state.
    out_ref[...] = (
        jnp.dot(h, w_fc_t_ref[...], preferred_element_type=jnp.float32)
        + b_fc_ref[...]
    )


def _reorder_gates(p, H):
    """PyTorch LSTM gate blocks [i, f, g, o] -> [i, f, o, g] along axis 0."""
    return jnp.concatenate([p[:2 * H], p[3 * H:4 * H], p[2 * H:3 * H]], axis=0)


def neural_network_forward(x, params):
    """Equivalent of NeuralNetwork.forward: returns fc(hidden), shape (1, B, F)."""
    w_ih, w_hh, b_ih, b_hh, w_fc, b_fc = params
    B, T, F = x.shape
    H = HIDDEN

    w_ih_t = jnp.transpose(_reorder_gates(w_ih, H)).astype(jnp.float32)  # (F, 4H)
    w_hh_t = jnp.transpose(_reorder_gates(w_hh, H)).astype(jnp.float32)  # (H, 4H)
    b = _reorder_gates(b_ih + b_hh, H).reshape(1, 4 * H).astype(jnp.float32)
    w_fc_t = jnp.transpose(w_fc).astype(jnp.float32)                     # (H, F)
    b_fc2 = b_fc.reshape(1, F).astype(jnp.float32)                       # (1, F)

    # Time-major, flattened: row block [t*B, (t+1)*B) is timestep t.
    x_flat = jnp.transpose(x, (1, 0, 2)).reshape(T * B, F).astype(jnp.float32)

    kernel = functools.partial(_lstm_fc_kernel, T=T, B=B, H=H)
    vmem = pl.BlockSpec(memory_space=pltpu.MemorySpace.VMEM)
    out = pl.pallas_call(
        kernel,
        out_shape=jax.ShapeDtypeStruct((B, F), jnp.float32),
        in_specs=[vmem] * 6,
        out_specs=vmem,
        scratch_shapes=[pltpu.VMEM((T * B, 4 * H), jnp.float32)],
    )(x_flat, w_ih_t, w_hh_t, b, w_fc_t, b_fc2)

    # PyTorch: hidden has shape (num_layers=1, B, H) -> fc(hidden) -> (1, B, F)
    return out.reshape(1, B, F)


def reference_forward(x, params):
    """Pure-JAX reference matching PyTorch nn.LSTM + nn.Linear semantics."""
    w_ih, w_hh, b_ih, b_hh, w_fc, b_fc = params
    B, T, F = x.shape
    H = HIDDEN
    h = jnp.zeros((B, H), jnp.float32)
    c = jnp.zeros((B, H), jnp.float32)
    for t in range(T):
        g = x[:, t, :] @ w_ih.T + h @ w_hh.T + b_ih + b_hh
        i = jax.nn.sigmoid(g[:, 0 * H:1 * H])
        f = jax.nn.sigmoid(g[:, 1 * H:2 * H])
        gg = jnp.tanh(g[:, 2 * H:3 * H])
        o = jax.nn.sigmoid(g[:, 3 * H:4 * H])
        c = f * c + i * gg
        h = o * jnp.tanh(c)
    return (h @ w_fc.T + b_fc).reshape(1, B, F)


def init_params(key, num_feature, hidden=HIDDEN):
    """Deterministic init matching the PyTorch module's parameter shapes."""
    k = jax.random.split(key, 6)
    bound = 1.0 / jnp.sqrt(hidden)
    u = lambda kk, shape: jax.random.uniform(kk, shape, jnp.float32, -bound, bound)
    w_ih = u(k[0], (4 * hidden, num_feature))   # lstm.weight_ih_l0
    w_hh = u(k[1], (4 * hidden, hidden))        # lstm.weight_hh_l0
    b_ih = u(k[2], (4 * hidden,))               # lstm.bias_ih_l0
    b_hh = u(k[3], (4 * hidden,))               # lstm.bias_hh_l0
    w_fc = u(k[4], (num_feature, hidden))       # fc.weight
    b_fc = u(k[5], (num_feature,))              # fc.bias
    return (w_ih, w_hh, b_ih, b_hh, w_fc, b_fc)


if __name__ == "__main__":
    num_feature = 8
    batch, seq = 2, 8

    key = jax.random.PRNGKey(0)
    kx, kp = jax.random.split(key)
    x = jax.random.normal(kx, (batch, seq, num_feature), jnp.float32)
    params = init_params(kp, num_feature)

    y = neural_network_forward(x, params)
    y = jax.block_until_ready(y)
    assert y.shape == (1, batch, num_feature), y.shape

    y_ref = reference_forward(x, params)
    assert jnp.allclose(y, y_ref, atol=2e-3, rtol=2e-3), (
        float(jnp.max(jnp.abs(y - y_ref))))

    print("KERNEL_OK")
</pallas_src>

<mosaic_0001>
module attributes {stable_mosaic.version = 11 : i64} {
  func.func @_lstm_fc_kernel(%arg0: memref<16x8xf32, #tpu.memory_space<vmem>>, %arg1: memref<8x256xf32, #tpu.memory_space<vmem>>, %arg2: memref<64x256xf32, #tpu.memory_space<vmem>>, %arg3: memref<1x256xf32, #tpu.memory_space<vmem>>, %arg4: memref<64x8xf32, #tpu.memory_space<vmem>>, %arg5: memref<1x8xf32, #tpu.memory_space<vmem>>, %arg6: memref<2x8xf32, #tpu.memory_space<vmem>>, %arg7: memref<16x256xf32, #tpu.memory_space<vmem>>) attributes {dimension_semantics = [], scalar_prefetch = 0 : i64, scratch_operands = 1 : i64, tpu.core_type = #tpu.core_type<tc>} {
    %c0 = arith.constant 0 : index
    %c0_0 = arith.constant 0 : index
    %0 = vector.load %arg0[%c0, %c0_0] : memref<16x8xf32, #tpu.memory_space<vmem>>, vector<16x8xf32>
    %c0_1 = arith.constant 0 : index
    %c0_2 = arith.constant 0 : index
    %1 = vector.load %arg1[%c0_1, %c0_2] : memref<8x256xf32, #tpu.memory_space<vmem>>, vector<8x256xf32>
    %cst = arith.constant dense<0.000000e+00> : vector<16x256xf32>
    %2 = tpu.matmul %0, %1, %cst {dimension_numbers = #tpu.dot_dimension_numbers<[1], [0], [0], [1], [0, 0, 1, 1], [], []>} : vector<16x8xf32>, vector<8x256xf32>, vector<16x256xf32> -> vector<16x256xf32>
    %c0_3 = arith.constant 0 : index
    %c0_4 = arith.constant 0 : index
    %3 = vector.load %arg3[%c0_3, %c0_4] : memref<1x256xf32, #tpu.memory_space<vmem>>, vector<1x256xf32>
    %4 = vector.broadcast %3 : vector<1x256xf32> to vector<16x256xf32>
    %5 = arith.addf %2, %4 : vector<16x256xf32>
    %c0_5 = arith.constant 0 : index
    %c0_6 = arith.constant 0 : index
    %6 = vector.load %arg7[%c0_5, %c0_6] : memref<16x256xf32, #tpu.memory_space<vmem>>, vector<16x256xf32>
    tpu.vector_store %arg7[%c0_5, %c0_6], %5 {strides = array<i32>} : memref<16x256xf32, #tpu.memory_space<vmem>>, vector<16x256xf32>,
    %c0_7 = arith.constant 0 : index
    %c0_8 = arith.constant 0 : index
    %7 = vector.load %arg2[%c0_7, %c0_8] : memref<64x256xf32, #tpu.memory_space<vmem>>, vector<64x256xf32>
    %cst_9 = arith.constant 0.000000e+00 : f32
    %8 = vector.broadcast %cst_9 : f32 to vector<2x64xf32>
    %cst_10 = arith.constant 0.000000e+00 : f32
    %9 = vector.broadcast %cst_10 : f32 to vector<2x64xf32>
    %c0_11 = arith.constant 0 : index
    %c0_12 = arith.constant 0 : index
    %10 = vector.load %arg7[%c0_11, %c0_12] : memref<16x256xf32, #tpu.memory_space<vmem>>, vector<2x256xf32>
    %cst_13 = arith.constant dense<0.000000e+00> : vector<2x256xf32>
    %11 = tpu.matmul %8, %7, %cst_13 {dimension_numbers = #tpu.dot_dimension_numbers<[1], [0], [0], [1], [0, 0, 1, 1], [], []>} : vector<2x64xf32>, vector<64x256xf32>, vector<2x256xf32> -> vector<2x256xf32>
    %12 = arith.addf %10, %11 : vector<2x256xf32>
    %13 = arith.negf %12 : vector<2x256xf32>
    %14 = math.exp %13 : vector<2x256xf32>
    %cst_14 = arith.constant 1.000000e+00 : f32
    %15 = vector.broadcast %cst_14 : f32 to vector<2x256xf32>
    %16 = arith.addf %15, %14 : vector<2x256xf32>
    %17 = arith.divf %15, %16 : vector<2x256xf32>
    %18 = vector.extract_strided_slice %17 {offsets = [0, 0], sizes = [2, 64], strides = [1, 1]} : vector<2x256xf32> to vector<2x64xf32>
    %19 = vector.extract_strided_slice %17 {offsets = [0, 64], sizes = [2, 64], strides = [1, 1]} : vector<2x256xf32> to vector<2x64xf32>
    %20 = vector.extract_strided_slice %17 {offsets = [0, 128], sizes = [2, 64], strides = [1, 1]} : vector<2x256xf32> to vector<2x64xf32>
    %21 = vector.extract_strided_slice %12 {offsets = [0, 192], sizes = [2, 64], strides = [1, 1]} : vector<2x256xf32> to vector<2x64xf32>
    %22 = math.tanh %21 : vector<2x64xf32>
    %23 = arith.mulf %19, %9 : vector<2x64xf32>
    %24 = arith.mulf %18, %22 : vector<2x64xf32>
    %25 = arith.addf %23, %24 : vector<2x64xf32>
    %26 = math.tanh %25 : vector<2x64xf32>
    %27 = arith.mulf %20, %26 : vector<2x64xf32>
    %c2 = arith.constant 2 : index
    %c0_15 = arith.constant 0 : index
    %28 = vector.load %arg7[%c2, %c0_15] : memref<16x256xf32, #tpu.memory_space<vmem>>, vector<2x256xf32>
    %cst_16 = arith.constant dense<0.000000e+00> : vector<2x256xf32>
    %29 = tpu.matmul %27, %7, %cst_16 {dimension_numbers = #tpu.dot_dimension_numbers<[1], [0], [0], [1], [0, 0, 1, 1], [], []>} : vector<2x64xf32>, vector<64x256xf32>, vector<2x256xf32> -> vector<2x256xf32>
    %30 = arith.addf %28, %29 : vector<2x256xf32>
    %31 = arith.negf %30 : vector<2x256xf32>
    %32 = math.exp %31 : vector<2x256xf32>
    %cst_17 = arith.constant 1.000000e+00 : f32
    %33 = vector.broadcast %cst_17 : f32 to vector<2x256xf32>
    %34 = arith.addf %33, %32 : vector<2x256xf32>
    %35 = arith.divf %33, %34 : vector<2x256xf32>
    %36 = vector.extract_strided_slice %35 {offsets = [0, 0], sizes = [2, 64], strides = [1, 1]} : vector<2x256xf32> to vector<2x64xf32>
    %37 = vector.extract_strided_slice %35 {offsets = [0, 64], sizes = [2, 64], strides = [1, 1]} : vector<2x256xf32> to vector<2x64xf32>
    %38 = vector.extract_strided_slice %35 {offsets = [0, 128], sizes = [2, 64], strides = [1, 1]} : vector<2x256xf32> to vector<2x64xf32>
    %39 = vector.extract_strided_slice %30 {offsets = [0, 192], sizes = [2, 64], strides = [1, 1]} : vector<2x256xf32> to vector<2x64xf32>
    %40 = math.tanh %39 : vector<2x64xf32>
    %41 = arith.mulf %37, %25 : vector<2x64xf32>
    %42 = arith.mulf %36, %40 : vector<2x64xf32>
    %43 = arith.addf %41, %42 : vector<2x64xf32>
    %44 = math.tanh %43 : vector<2x64xf32>
    %45 = arith.mulf %38, %44 : vector<2x64xf32>
    %c4 = arith.constant 4 : index
    %c0_18 = arith.constant 0 : index
    %46 = vector.load %arg7[%c4, %c0_18] : memref<16x256xf32, #tpu.memory_space<vmem>>, vector<2x256xf32>
    %cst_19 = arith.constant dense<0.000000e+00> : vector<2x256xf32>
    %47 = tpu.matmul %45, %7, %cst_19 {dimension_numbers = #tpu.dot_dimension_numbers<[1], [0], [0], [1], [0, 0, 1, 1], [], []>} : vector<2x64xf32>, vector<64x256xf32>, vector<2x256xf32> -> vector<2x256xf32>
    %48 = arith.addf %46, %47 : vector<2x256xf32>
    %49 = arith.negf %48 : vector<2x256xf32>
    %50 = math.exp %49 : vector<2x256xf32>
    %cst_20 = arith.constant 1.000000e+00 : f32
    %51 = vector.broadcast %cst_20 : f32 to vector<2x256xf32>
    %52 = arith.addf %51, %50 : vector<2x256xf32>
    %53 = arith.divf %51, %52 : vector<2x256xf32>
    %54 = vector.extract_strided_slice %53 {offsets = [0, 0], sizes = [2, 64], strides = [1, 1]} : vector<2x256xf32> to vector<2x64xf32>
    %55 = vector.extract_strided_slice %53 {offsets = [0, 64], sizes = [2, 64], strides = [1, 1]} : vector<2x256xf32> to vector<2x64xf32>
    %56 = vector.extract_strided_slice %53 {offsets = [0, 128], sizes = [2, 64], strides = [1, 1]} : vector<2x256xf32> to vector<2x64xf32>
    %57 = vector.extract_strided_slice %48 {offsets = [0, 192], sizes = [2, 64], strides = [1, 1]} : vector<2x256xf32> to vector<2x64xf32>
    %58 = math.tanh %57 : vector<2x64xf32>
    %59 = arith.mulf %55, %43 : vector<2x64xf32>
    %60 = arith.mulf %54, %58 : vector<2x64xf32>
    %61 = arith.addf %59, %60 : vector<2x64xf32>
    %62 = math.tanh %61 : vector<2x64xf32>
    %63 = arith.mulf %56, %62 : vector<2x64xf32>
    %c6 = arith.constant 6 : index
    %c0_21 = arith.constant 0 : index
    %64 = vector.load %arg7[%c6, %c0_21] : memref<16x256xf32, #tpu.memory_space<vmem>>, vector<2x256xf32>
    %cst_22 = arith.constant dense<0.000000e+00> : vector<2x256xf32>
    %65 = tpu.matmul %63, %7, %cst_22 {dimension_numbers = #tpu.dot_dimension_numbers<[1], [0], [0], [1], [0, 0, 1, 1], [], []>} : vector<2x64xf32>, vector<64x256xf32>, vector<2x256xf32> -> vector<2x256xf32>
    %66 = arith.addf %64, %65 : vector<2x256xf32>
    %67 = arith.negf %66 : vector<2x256xf32>
    %68 = math.exp %67 : vector<2x256xf32>
    %cst_23 = arith.constant 1.000000e+00 : f32
    %69 = vector.broadcast %cst_23 : f32 to vector<2x256xf32>
    %70 = arith.addf %69, %68 : vector<2x256xf32>
    %71 = arith.divf %69, %70 : vector<2x256xf32>
    %72 = vector.extract_strided_slice %71 {offsets = [0, 0], sizes = [2, 64], strides = [1, 1]} : vector<2x256xf32> to vector<2x64xf32>
    %73 = vector.extract_strided_slice %71 {offsets = [0, 64], sizes = [2, 64], strides = [1, 1]} : vector<2x256xf32> to vector<2x64xf32>
    %74 = vector.extract_strided_slice %71 {offsets = [0, 128], sizes = [2, 64], strides = [1, 1]} : vector<2x256xf32> to vector<2x64xf32>
    %75 = vector.extract_strided_slice %66 {offsets = [0, 192], sizes = [2, 64], strides = [1, 1]} : vector<2x256xf32> to vector<2x64xf32>
    %76 = math.tanh %75 : vector<2x64xf32>
    %77 = arith.mulf %73, %61 : vector<2x64xf32>
    %78 = arith.mulf %72, %76 : vector<2x64xf32>
    %79 = arith.addf %77, %78 : vector<2x64xf32>
    %80 = math.tanh %79 : vector<2x64xf32>
    %81 = arith.mulf %74, %80 : vector<2x64xf32>
    %c8 = arith.constant 8 : index
    %c0_24 = arith.constant 0 : index
    %82 = vector.load %arg7[%c8, %c0_24] : memref<16x256xf32, #tpu.memory_space<vmem>>, vector<2x256xf32>
    %cst_25 = arith.constant dense<0.000000e+00> : vector<2x256xf32>
    %83 = tpu.matmul %81, %7, %cst_25 {dimension_numbers = #tpu.dot_dimension_numbers<[1], [0], [0], [1], [0, 0, 1, 1], [], []>} : vector<2x64xf32>, vector<64x256xf32>, vector<2x256xf32> -> vector<2x256xf32>
    %84 = arith.addf %82, %83 : vector<2x256xf32>
    %85 = arith.negf %84 : vector<2x256xf32>
    %86 = math.exp %85 : vector<2x256xf32>
    %cst_26 = arith.constant 1.000000e+00 : f32
    %87 = vector.broadcast %cst_26 : f32 to vector<2x256xf32>
    %88 = arith.addf %87, %86 : vector<2x256xf32>
    %89 = arith.divf %87, %88 : vector<2x256xf32>
    %90 = vector.extract_strided_slice %89 {offsets = [0, 0], sizes = [2, 64], strides = [1, 1]} : vector<2x256xf32> to vector<2x64xf32>
    %91 = vector.extract_strided_slice %89 {offsets = [0, 64], sizes = [2, 64], strides = [1, 1]} : vector<2x256xf32> to vector<2x64xf32>
    %92 = vector.extract_strided_slice %89 {offsets = [0, 128], sizes = [2, 64], strides = [1, 1]} : vector<2x256xf32> to vector<2x64xf32>
    %93 = vector.extract_strided_slice %84 {offsets = [0, 192], sizes = [2, 64], strides = [1, 1]} : vector<2x256xf32> to vector<2x64xf32>
    %94 = math.tanh %93 : vector<2x64xf32>
    %95 = arith.mulf %91, %79 : vector<2x64xf32>
    %96 = arith.mulf %90, %94 : vector<2x64xf32>
    %97 = arith.addf %95, %96 : vector<2x64xf32>
    %98 = math.tanh %97 : vector<2x64xf32>
    %99 = arith.mulf %92, %98 : vector<2x64xf32>
    %c10 = arith.constant 10 : index
    %c0_27 = arith.constant 0 : index
    %100 = vector.load %arg7[%c10, %c0_27] : memref<16x256xf32, #tpu.memory_space<vmem>>, vector<2x256xf32>
    %cst_28 = arith.constant dense<0.000000e+00> : vector<2x256xf32>
    %101 = tpu.matmul %99, %7, %cst_28 {dimension_numbers = #tpu.dot_dimension_numbers<[1], [0], [0], [1], [0, 0, 1, 1], [], []>} : vector<2x64xf32>, vector<64x256xf32>, vector<2x256xf32> -> vector<2x256xf32>
    %102 = arith.addf %100, %101 : vector<2x256xf32>
    %103 = arith.negf %102 : vector<2x256xf32>
    %104 = math.exp %103 : vector<2x256xf32>
    %cst_29 = arith.constant 1.000000e+00 : f32
    %105 = vector.broadcast %cst_29 : f32 to vector<2x256xf32>
    %106 = arith.addf %105, %104 : vector<2x256xf32>
    %107 = arith.divf %105, %106 : vector<2x256xf32>
    %108 = vector.extract_strided_slice %107 {offsets = [0, 0], sizes = [2, 64], strides = [1, 1]} : vector<2x256xf32> to vector<2x64xf32>
    %109 = vector.extract_strided_slice %107 {offsets = [0, 64], sizes = [2, 64], strides = [1, 1]} : vector<2x256xf32> to vector<2x64xf32>
    %110 = vector.extract_strided_slice %107 {offsets = [0, 128], sizes = [2, 64], strides = [1, 1]} : vector<2x256xf32> to vector<2x64xf32>
    %111 = vector.extract_strided_slice %102 {offsets = [0, 192], sizes = [2, 64], strides = [1, 1]} : vector<2x256xf32> to vector<2x64xf32>
    %112 = math.tanh %111 : vector<2x64xf32>
    %113 = arith.mulf %109, %97 : vector<2x64xf32>
    %114 = arith.mulf %108, %112 : vector<2x64xf32>
    %115 = arith.addf %113, %114 : vector<2x64xf32>
    %116 = math.tanh %115 : vector<2x64xf32>
    %117 = arith.mulf %110, %116 : vector<2x64xf32>
    %c12 = arith.constant 12 : index
    %c0_30 = arith.constant 0 : index
    %118 = vector.load %arg7[%c12, %c0_30] : memref<16x256xf32, #tpu.memory_space<vmem>>, vector<2x256xf32>
    %cst_31 = arith.constant dense<0.000000e+00> : vector<2x256xf32>
    %119 = tpu.matmul %117, %7, %cst_31 {dimension_numbers = #tpu.dot_dimension_numbers<[1], [0], [0], [1], [0, 0, 1, 1], [], []>} : vector<2x64xf32>, vector<64x256xf32>, vector<2x256xf32> -> vector<2x256xf32>
    %120 = arith.addf %118, %119 : vector<2x256xf32>
    %121 = arith.negf %120 : vector<2x256xf32>
    %122 = math.exp %121 : vector<2x256xf32>
    %cst_32 = arith.constant 1.000000e+00 : f32
    %123 = vector.broadcast %cst_32 : f32 to vector<2x256xf32>
    %124 = arith.addf %123, %122 : vector<2x256xf32>
    %125 = arith.divf %123, %124 : vector<2x256xf32>
    %126 = vector.extract_strided_slice %125 {offsets = [0, 0], sizes = [2, 64], strides = [1, 1]} : vector<2x256xf32> to vector<2x64xf32>
    %127 = vector.extract_strided_slice %125 {offsets = [0, 64], sizes = [2, 64], strides = [1, 1]} : vector<2x256xf32> to vector<2x64xf32>
    %128 = vector.extract_strided_slice %125 {offsets = [0, 128], sizes = [2, 64], strides = [1, 1]} : vector<2x256xf32> to vector<2x64xf32>
    %129 = vector.extract_strided_slice %120 {offsets = [0, 192], sizes = [2, 64], strides = [1, 1]} : vector<2x256xf32> to vector<2x64xf32>
    %130 = math.tanh %129 : vector<2x64xf32>
    %131 = arith.mulf %127, %115 : vector<2x64xf32>
    %132 = arith.mulf %126, %130 : vector<2x64xf32>
    %133 = arith.addf %131, %132 : vector<2x64xf32>
    %134 = math.tanh %133 : vector<2x64xf32>
    %135 = arith.mulf %128, %134 : vector<2x64xf32>
    %c14 = arith.constant 14 : index
    %c0_33 = arith.constant 0 : index
    %136 = vector.load %arg7[%c14, %c0_33] : memref<16x256xf32, #tpu.memory_space<vmem>>, vector<2x256xf32>
    %cst_34 = arith.constant dense<0.000000e+00> : vector<2x256xf32>
    %137 = tpu.matmul %135, %7, %cst_34 {dimension_numbers = #tpu.dot_dimension_numbers<[1], [0], [0], [1], [0, 0, 1, 1], [], []>} : vector<2x64xf32>, vector<64x256xf32>, vector<2x256xf32> -> vector<2x256xf32>
    %138 = arith.addf %136, %137 : vector<2x256xf32>
    %139 = arith.negf %138 : vector<2x256xf32>
    %140 = math.exp %139 : vector<2x256xf32>
    %cst_35 = arith.constant 1.000000e+00 : f32
    %141 = vector.broadcast %cst_35 : f32 to vector<2x256xf32>
    %142 = arith.addf %141, %140 : vector<2x256xf32>
    %143 = arith.divf %141, %142 : vector<2x256xf32>
    %144 = vector.extract_strided_slice %143 {offsets = [0, 0], sizes = [2, 64], strides = [1, 1]} : vector<2x256xf32> to vector<2x64xf32>
    %145 = vector.extract_strided_slice %143 {offsets = [0, 64], sizes = [2, 64], strides = [1, 1]} : vector<2x256xf32> to vector<2x64xf32>
    %146 = vector.extract_strided_slice %143 {offsets = [0, 128], sizes = [2, 64], strides = [1, 1]} : vector<2x256xf32> to vector<2x64xf32>
    %147 = vector.extract_strided_slice %138 {offsets = [0, 192], sizes = [2, 64], strides = [1, 1]} : vector<2x256xf32> to vector<2x64xf32>
    %148 = math.tanh %147 : vector<2x64xf32>
    %149 = arith.mulf %145, %133 : vector<2x64xf32>
    %150 = arith.mulf %144, %148 : vector<2x64xf32>
    %151 = arith.addf %149, %150 : vector<2x64xf32>
    %152 = math.tanh %151 : vector<2x64xf32>
    %153 = arith.mulf %146, %152 : vector<2x64xf32>
    %c0_36 = arith.constant 0 : index
    %c0_37 = arith.constant 0 : index
    %154 = vector.load %arg4[%c0_36, %c0_37] : memref<64x8xf32, #tpu.memory_space<vmem>>, vector<64x8xf32>
    %cst_38 = arith.constant dense<0.000000e+00> : vector<2x8xf32>
    %155 = tpu.matmul %153, %154, %cst_38 {dimension_numbers = #tpu.dot_dimension_numbers<[1], [0], [0], [1], [0, 0, 1, 1], [], []>} : vector<2x64xf32>, vector<64x8xf32>, vector<2x8xf32> -> vector<2x8xf32>
    %c0_39 = arith.constant 0 : index
    %c0_40 = arith.constant 0 : index
    %156 = vector.load %arg5[%c0_39, %c0_40] : memref<1x8xf32, #tpu.memory_space<vmem>>, vector<1x8xf32>
    %157 = vector.broadcast %156 : vector<1x8xf32> to vector<2x8xf32>
    %158 = arith.addf %155, %157 : vector<2x8xf32>
    %c0_41 = arith.constant 0 : index
    %c0_42 = arith.constant 0 : index
    %159 = vector.load %arg6[%c0_41, %c0_42] : memref<2x8xf32, #tpu.memory_space<vmem>>, vector<2x8xf32>
    tpu.vector_store %arg6[%c0_41, %c0_42], %158 {strides = array<i32>} : memref<2x8xf32, #tpu.memory_space<vmem>>, vector<2x8xf32>,
    return
  }
}

</mosaic_0001>

<llo_original>
// kernel: tpu_custom_call.1
$region0: #{tpu_custom_call.1}
  #allocation0 [shape = 'u32[]', space=smem, size = 0x4, offset = 0x4, fixed_abs, tag = 'smem constant byte address 0x4 - core index']
  #allocation1 [shape = 'u32[144,128]{1,0:T(1,128)}', space=vmem, size = 0x12000, scoped, tag = 'internal scratch']
  #allocation2 [shape = 'f32[16,256]{1,0:T(8,128)}', space=vmem, size = 0x4000, scoped, tag = 'scratch operand']
  %s0 = inlined_call_operand.vmem [shape: f32[16,8], index: 0, kind: input, shape index: {}]
  %s1 = inlined_call_operand.vmem [shape: f32[8,256], index: 1, kind: input, shape index: {}]
  %s2 = inlined_call_operand.hbm [shape: f32[64,256], index: 2, kind: input, shape index: {}]
  %s3 = inlined_call_operand.vmem [shape: f32[1,256], index: 3, kind: input, shape index: {}]
  %s4 = inlined_call_operand.vmem [shape: f32[64,8], index: 4, kind: input, shape index: {}]
  %s5 = inlined_call_operand.vmem [shape: f32[1,8], index: 5, kind: input, shape index: {}]
  %s6 = inlined_call_operand.hbm [shape: f32[2,8], index: 6, kind: output, shape index: {}]
  %s7 = sld [smem:[#allocation0]]
  $region38: #{tpu_custom_call.1} parent=0
    _
  %s9 = ssub.s32 1, %s7
  %s10 = scalar_select 0, %s9, %s7
  $region1: #{tpu_custom_call.1} parent=0
    #allocation3 [shape = 'u8[65536]{0}', space=vmem, size = 0x10000, scoped, tag = 'input window, operand 2, single buffered']
    #allocation4 [shape = 's32[1]{0}', space=sflag, size = 0x4, scoped, tag = 'scoped memory for tpu_custom_call.1']
    #allocation5 [shape = 's32[1]{0}', space=sflag, size = 0x4, scoped, tag = 'scoped memory for tpu_custom_call.1']
    #allocation6 [shape = 'u8[1024]{0}', space=vmem, size = 0x400, scoped, tag = 'output window, operand 0, single buffered']
    %11 = vsyncpa [#allocation4], 0
    %12 = vsyncpa [#allocation5], 0
    // Predicated region
    $region2: #{tpu_custom_call.1} parent=1 // pred_check
      _
    $region3: #{tpu_custom_call.1} parent=1 // pred_check_branch
      %14 = sbr.rel (0) target = $region5
    $region4: #{tpu_custom_call.1} parent=1 // pred_region
      _
    $region5: #{tpu_custom_call.1} parent=1 // pred_fallthru
      _
    // Predicated region
    $region6: #{tpu_custom_call.1} parent=1 // pred_check
      _
    $region7: #{tpu_custom_call.1} parent=1 // pred_check_branch
      %16 = sbr.rel (0) target = $region9
    $region8: #{tpu_custom_call.1} parent=1 // pred_region
      _
    $region9: #{tpu_custom_call.1} parent=1 // pred_fallthru
      _
    // Predicated region
    $region10: #{tpu_custom_call.1} parent=1 // pred_check
      _
    $region11: #{tpu_custom_call.1} parent=1 // pred_check_branch
      %18 = sbr.rel (0) target = $region13
    $region12: #{tpu_custom_call.1} parent=1 // pred_region
      %s20 = ssub.s32 2048, 2048
      %21 = vsyncadd [#allocation4], %s20
      %s22 = sshll.u32 [#allocation3], 4
      %s23 = int_to_ptr.vmem [resolvable:$true] %s22
      %28 = dma.hbm_to_vmem [thread:$0]  %s2, 2048, %s23, [#allocation4], 256, 256, 16
    $region13: #{tpu_custom_call.1} parent=1 // pred_fallthru
      _
    // Predicated region
    $region14: #{tpu_custom_call.1} parent=1 // pred_check
      _
    $region15: #{tpu_custom_call.1} parent=1 // pred_check_branch
      %30 = sbr.rel (0) target = $region17
    $region16: #{tpu_custom_call.1} parent=1 // pred_region
      _
    $region17: #{tpu_custom_call.1} parent=1 // pred_fallthru
      _
    // Predicated region
    $region18: #{tpu_custom_call.1} parent=1 // pred_check
      _
    $region19: #{tpu_custom_call.1} parent=1 // pred_check_branch
      %32 = sbr.rel (0) target = $region21
    $region20: #{tpu_custom_call.1} parent=1 // pred_region
      _
    $region21: #{tpu_custom_call.1} parent=1 // pred_fallthru
      _
    // Predicated region
    $region22: #{tpu_custom_call.1} parent=1 // pred_check
      _
    $region23: #{tpu_custom_call.1} parent=1 // pred_check_branch
      %34 = sbr.rel (0) target = $region25
    $region24: #{tpu_custom_call.1} parent=1 // pred_region
      _
    $region25: #{tpu_custom_call.1} parent=1 // pred_fallthru
      _
    // Predicated region
    $region26: #{tpu_custom_call.1} parent=1 // pred_check
      _
    $region27: #{tpu_custom_call.1} parent=1 // pred_check_branch
      %36 = sbr.rel (0) target = $region29
    $region28: #{tpu_custom_call.1} parent=1 // pred_region
      %37 = dma.done [#allocation4], 2048
    $region29: #{tpu_custom_call.1} parent=1 // pred_fallthru
      _
    %v38 = vld [vmem:[%s0] sm:$0xff]
    %v39 = vld [vmem:[%s0 + $0x8] sm:$0xff]
    %v40 = vld [vmem:[%s1] sm:$0xff]
    %v41 = vld [vmem:[%s1 + $0x8] sm:$0xff]
    %v42 = vld [vmem:[%s3] sm:$0x3]
    %v44 = vlaneseq
    %v45 = vshrl.u32 %v44, 7
    %v46 = vsub.s32 0, %v45
    %v47 = vrot.slane %v42, %v46
    %v48 = vlaneseq
    %v49 = vshrl.u32 %v48, 7
    %v50 = vsub.s32 1, %v49
    %v51 = vrot.slane %v42, %v50
    %vm54 = vcmask 64512
    %v56 = vsel %vm54, %v38, 0
    %v59 = vsel %vm54, %v39, 0
    %61 = vmatprep.subr.mxu0 0.0
    %62 = vmatpush1.msra.mxu0 0.0
    %63 = vmatprep.subr.mxu0 0.0
    %64 = vmatpush1.msra.mxu0 0.0
    %65 = vmatprep.subr.mxu0 0.0
    %66 = vmatpush1.msra.mxu0 0.0
    %67 = vmatprep.subr.mxu0 0.0
    %68 = vmatpush1.msra.mxu0 0.0
    %69 = vmatprep.subr.mxu0 0.0
    %70 = vmatpush1.msra.mxu0 0.0
    %71 = vmatprep.subr.mxu0 0.0
    %72 = vmatpush1.msra.mxu0 0.0
    %73 = vmatprep.subr.mxu0 0.0
    %74 = vmatpush1.msra.mxu0 0.0
    %75 = vmatprep.subr.mxu0 0.0
    %76 = vmatpush1.msra.mxu0 0.0
    %77 = vmatprep.subr.mxu0 0.0
    %78 = vmatpush1.msra.mxu0 0.0
    %79 = vmatprep.subr.mxu0 0.0
    %80 = vmatpush1.msra.mxu0 0.0
    %81 = vmatprep.subr.mxu0 0.0
    %82 = vmatpush1.msra.mxu0 0.0
    %83 = vmatprep.subr.mxu0 0.0
    %84 = vmatpush1.msra.mxu0 0.0
    %85 = vmatprep.subr.mxu0 0.0
    %86 = vmatpush1.msra.mxu0 0.0
    %87 = vmatprep.subr.mxu0 0.0
    %88 = vmatpush1.msra.mxu0 0.0
    %89 = vmatprep.subr.mxu0 0.0
    %90 = vmatpush1.msra.mxu0 0.0
    %91 = vmatprep.subr.mxu0 %v41
    %92 = vmatpush1.msra.mxu0 %v40
    %93 = vmatprep.subr.mxu0 0.0
    %94 = vmatpush2.msra.mxu0 0.0
    %95 = vmatprep.subr.mxu0 0.0
    %96 = vmatpush2.msra.mxu0 0.0
    %97 = vmatprep.subr.mxu0 0.0
    %98 = vmatpush2.msra.mxu0 0.0
    %99 = vmatprep.subr.mxu0 0.0
    %100 = vmatpush2.msra.mxu0 0.0
    %101 = vmatprep.subr.mxu0 0.0
    %102 = vmatpush2.msra.mxu0 0.0
    %103 = vmatprep.subr.mxu0 0.0
    %104 = vmatpush2.msra.mxu0 0.0
    %105 = vmatprep.subr.mxu0 0.0
    %106 = vmatpush2.msra.mxu0 0.0
    %107 = vmatprep.subr.mxu0 0.0
    %108 = vmatpush2.msra.mxu0 0.0
    %109 = vmatprep.subr.mxu0 0.0
    %110 = vmatpush2.msra.mxu0 0.0
    %111 = vmatprep.subr.mxu0 0.0
    %112 = vmatpush2.msra.mxu0 0.0
    %113 = vmatprep.subr.mxu0 0.0
    %114 = vmatpush2.msra.mxu0 0.0
    %115 = vmatprep.subr.mxu0 0.0
    %116 = vmatpush2.msra.mxu0 0.0
    %117 = vmatprep.subr.mxu0 0.0
    %118 = vmatpush2.msra.mxu0 0.0
    %119 = vmatprep.subr.mxu0 0.0
    %120 = vmatpush2.msra.mxu0 0.0
    %121 = vmatprep.subr.mxu0 0.0
    %122 = vmatpush2.msra.mxu0 0.0
    %123 = vmatprep.subr.mxu0 0.0
    %124 = vmatpush2.msra.mxu0 0.0
    %125 = vmatprep.mubr.f32.mxu0 0.0
    %126 = vmatmul.mubr.f32.gmra.mxu0 %v56
    %v127 = vpop.f32.mrf.mxu0
    %v128 = vadd.f32 %v47, %v127
    %v129 = vpop.f32.mrf.mxu0
    %v130 = vadd.f32 %v51, %v129
    %131 = vmatprep.mubr.f32.mxu0 0.0
    %132 = vmatmul.mubr.f32.gmra.mxu0 %v59
    %v133 = vpop.f32.mrf.mxu0
    %v134 = vadd.f32 %v47, %v133
    %v135 = vpop.f32.mrf.mxu0
    %v136 = vadd.f32 %v51, %v135
    %137 = vdwg.mxu0
    %138 = vst [vmem:[#allocation2] sm:$0xff] %v128
    %139 = vst [vmem:[#allocation2 + $0x8] sm:$0xff] %v130
    %140 = vst [vmem:[#allocation2 + $0x10] sm:$0xff] %v134
    %141 = vst [vmem:[#allocation2 + $0x18] sm:$0xff] %v136
    %v142 = vld [vmem:[#allocation3] sm:$0xff]
    %v143 = vld [vmem:[#allocation3 + $0x8] sm:$0xff]
    %v144 = vld [vmem:[#allocation3 + $0x10] sm:$0xff]
    %v145 = vld [vmem:[#allocation3 + $0x18] sm:$0xff]
    %v146 = vld [vmem:[#allocation3 + $0x20] sm:$0xff]
    %v147 = vld [vmem:[#allocation3 + $0x28] sm:$0xff]
    %v148 = vld [vmem:[#allocation3 + $0x30] sm:$0xff]
    %v149 = vld [vmem:[#allocation3 + $0x38] sm:$0xff]
    %v150 = vld [vmem:[#allocation3 + $0x40] sm:$0xff]
    %v151 = vld [vmem:[#allocation3 + $0x48] sm:$0xff]
    %v152 = vld [vmem:[#allocation3 + $0x50] sm:$0xff]
    %v153 = vld [vmem:[#allocation3 + $0x58] sm:$0xff]
    %v154 = vld [vmem:[#allocation3 + $0x60] sm:$0xff]
    %v155 = vld [vmem:[#allocation3 + $0x68] sm:$0xff]
    %v156 = vld [vmem:[#allocation3 + $0x70] sm:$0xff]
    %v157 = vld [vmem:[#allocation3 + $0x78] sm:$0xff]
    %v158 = vld [vmem:[#allocation2] sm:$0x3]
    %v159 = vld [vmem:[#allocation2 + $0x8] sm:$0x3]
    %vm160 = vcmask 523264
    %v162 = vsel %vm160, 0.0, 0
    %164 = vmatprep.subr.mxu0 0.0
    %165 = vmatpush1.msra.mxu0 0.0
    %166 = vmatprep.subr.mxu0 0.0
    %167 = vmatpush1.msra.mxu0 0.0
    %168 = vmatprep.subr.mxu0 0.0
    %169 = vmatpush1.msra.mxu0 0.0
    %170 = vmatprep.subr.mxu0 0.0
    %171 = vmatpush1.msra.mxu0 0.0
    %172 = vmatprep.subr.mxu0 0.0
    %173 = vmatpush1.msra.mxu0 0.0
    %174 = vmatprep.subr.mxu0 0.0
    %175 = vmatpush1.msra.mxu0 0.0
    %176 = vmatprep.subr.mxu0 0.0
    %177 = vmatpush1.msra.mxu0 0.0
    %178 = vmatprep.subr.mxu0 0.0
    %179 = vmatpush1.msra.mxu0 0.0
    %180 = vmatprep.subr.mxu0 %v157
    %181 = vmatpush1.msra.mxu0 %v156
    %182 = vmatprep.subr.mxu0 %v155
    %183 = vmatpush1.msra.mxu0 %v154
    %184 = vmatprep.subr.mxu0 %v153
    %185 = vmatpush1.msra.mxu0 %v152
    %186 = vmatprep.subr.mxu0 %v151
    %187 = vmatpush1.msra.mxu0 %v150
    %188 = vmatprep.subr.mxu0 %v149
    %189 = vmatpush1.msra.mxu0 %v148
    %190 = vmatprep.subr.mxu0 %v147
    %191 = vmatpush1.msra.mxu0 %v146
    %192 = vmatprep.subr.mxu0 %v145
    %193 = vmatpush1.msra.mxu0 %v144
    %194 = vmatprep.subr.mxu0 %v143
    %195 = vmatpush1.msra.mxu0 %v142
    %196 = vmatprep.subr.mxu0 0.0
    %197 = vmatpush2.msra.mxu0 0.0
    %198 = vmatprep.subr.mxu0 0.0
    %199 = vmatpush2.msra.mxu0 0.0
    %200 = vmatprep.subr.mxu0 0.0
    %201 = vmatpush2.msra.mxu0 0.0
    %202 = vmatprep.subr.mxu0 0.0
    %203 = vmatpush2.msra.mxu0 0.0
    %204 = vmatprep.subr.mxu0 0.0
    %205 = vmatpush2.msra.mxu0 0.0
    %206 = vmatprep.subr.mxu0 0.0
    %207 = vmatpush2.msra.mxu0 0.0
    %208 = vmatprep.subr.mxu0 0.0
    %209 = vmatpush2.msra.mxu0 0.0
    %210 = vmatprep.subr.mxu0 0.0
    %211 = vmatpush2.msra.mxu0 0.0
    %212 = vmatprep.subr.mxu0 0.0
    %213 = vmatpush2.msra.mxu0 0.0
    %214 = vmatprep.subr.mxu0 0.0
    %215 = vmatpush2.msra.mxu0 0.0
    %216 = vmatprep.subr.mxu0 0.0
    %217 = vmatpush2.msra.mxu0 0.0
    %218 = vmatprep.subr.mxu0 0.0
    %219 = vmatpush2.msra.mxu0 0.0
    %220 = vmatprep.subr.mxu0 0.0
    %221 = vmatpush2.msra.mxu0 0.0
    %222 = vmatprep.subr.mxu0 0.0
    %223 = vmatpush2.msra.mxu0 0.0
    %224 = vmatprep.subr.mxu0 0.0
    %225 = vmatpush2.msra.mxu0 0.0
    %226 = vmatprep.subr.mxu0 0.0
    %227 = vmatpush2.msra.mxu0 0.0
    %228 = vmatprep.mubr.f32.mxu0 0.0
    %229 = vmatmul.mubr.f32.gmra.mxu0 %v162
    %v230 = vpop.f32.mrf.mxu0
    %v231 = vadd.f32 0.0, %v230
    %v232 = vpop.f32.mrf.mxu0
    %v233 = vadd.f32 0.0, %v232
    %234 = vdwg.mxu0
    %v235 = vadd.f32 %v158, %v231
    %v236 = vadd.f32 %v159, %v233
    %v237 = vxor.u32 %v235, 2147483648
    %v238 = vxor.u32 %v236, 2147483648
    %v239 = vmul.f32 %v237, 1.442695
    %v240 = vpow.pop %v239
    %v241 = vmul.f32 %v238, 1.442695
    %v242 = vpow.pop %v241
    %v243 = vadd.f32 %v240, 1.0
    %v244 = vadd.f32 %v242, 1.0
    %v245 = vrcp.pop %v243
    %v246 = vmul.f32 1.0, %v245
    %v247 = vrcp.pop %v244
    %v248 = vmul.f32 1.0, %v247
    %v249 = vtanh.pop %v236
    %v250 = vmul.f32 %v246, 0.0
    %252 = vrot.lane.b32.xlu0 %v249, 64
    %v253 = vpop.permute.xlu0 %252
    %v255 = vmul.f32 %v246, %v253
    %257 = vrot.lane.b32.xlu0 %v255, 64
    %v258 = vpop.permute.xlu0 %257
    %v260 = vadd.f32 %v250, %v258
    %v261 = vtanh.pop %v260
    %263 = vrot.lane.b32.xlu0 %v261, 64
    %v264 = vpop.permute.xlu0 %263
    %v266 = vmul.f32 %v248, %v264
    %v267 = vld [vmem:[#allocation2] sm:$0xc]
    %v268 = vld [vmem:[#allocation2 + $0x8] sm:$0xc]
    %v270 = vsel %vm160, %v266, 0
    %272 = vmatprep.subr.mxu0 0.0
    %273 = vmatpush1.msra.mxu0 0.0
    %274 = vmatprep.subr.mxu0 0.0
    %275 = vmatpush1.msra.mxu0 0.0
    %276 = vmatprep.subr.mxu0 0.0
    %277 = vmatpush1.msra.mxu0 0.0
    %278 = vmatprep.subr.mxu0 0.0
    %279 = vmatpush1.msra.mxu0 0.0
    %280 = vmatprep.subr.mxu0 0.0
    %281 = vmatpush1.msra.mxu0 0.0
    %282 = vmatprep.subr.mxu0 0.0
    %283 = vmatpush1.msra.mxu0 0.0
    %284 = vmatprep.subr.mxu0 0.0
    %285 = vmatpush1.msra.mxu0 0.0
    %286 = vmatprep.subr.mxu0 0.0
    %287 = vmatpush1.msra.mxu0 0.0
    %288 = vmatprep.subr.mxu0 %v157
    %289 = vmatpush1.msra.mxu0 %v156
    %290 = vmatprep.subr.mxu0 %v155
    %291 = vmatpush1.msra.mxu0 %v154
    %292 = vmatprep.subr.mxu0 %v153
    %293 = vmatpush1.msra.mxu0 %v152
    %294 = vmatprep.subr.mxu0 %v151
    %295 = vmatpush1.msra.mxu0 %v150
    %296 = vmatprep.subr.mxu0 %v149
    %297 = vmatpush1.msra.mxu0 %v148
    %298 = vmatprep.subr.mxu0 %v147
    %299 = vmatpush1.msra.mxu0 %v146
    %300 = vmatprep.subr.mxu0 %v145
    %301 = vmatpush1.msra.mxu0 %v144
    %302 = vmatprep.subr.mxu0 %v143
    %303 = vmatpush1.msra.mxu0 %v142
    %304 = vmatprep.subr.mxu0 0.0
    %305 = vmatpush2.msra.mxu0 0.0
    %306 = vmatprep.subr.mxu0 0.0
    %307 = vmatpush2.msra.mxu0 0.0
    %308 = vmatprep.subr.mxu0 0.0
    %309 = vmatpush2.msra.mxu0 0.0
    %310 = vmatprep.subr.mxu0 0.0
    %311 = vmatpush2.msra.mxu0 0.0
    %312 = vmatprep.subr.mxu0 0.0
    %313 = vmatpush2.msra.mxu0 0.0
    %314 = vmatprep.subr.mxu0 0.0
    %315 = vmatpush2.msra.mxu0 0.0
    %316 = vmatprep.subr.mxu0 0.0
    %317 = vmatpush2.msra.mxu0 0.0
    %318 = vmatprep.subr.mxu0 0.0
    %319 = vmatpush2.msra.mxu0 0.0
    %320 = vmatprep.subr.mxu0 0.0
    %321 = vmatpush2.msra.mxu0 0.0
    %322 = vmatprep.subr.mxu0 0.0
    %323 = vmatpush2.msra.mxu0 0.0
    %324 = vmatprep.subr.mxu0 0.0
    %325 = vmatpush2.msra.mxu0 0.0
    %326 = vmatprep.subr.mxu0 0.0
    %327 = vmatpush2.msra.mxu0 0.0
    %328 = vmatprep.subr.mxu0 0.0
    %329 = vmatpush2.msra.mxu0 0.0
    %330 = vmatprep.subr.mxu0 0.0
    %331 = vmatpush2.msra.mxu0 0.0
    %332 = vmatprep.subr.mxu0 0.0
    %333 = vmatpush2.msra.mxu0 0.0
    %334 = vmatprep.subr.mxu0 0.0
    %335 = vmatpush2.msra.mxu0 0.0
    %336 = vmatprep.mubr.f32.mxu0 0.0
    %337 = vmatmul.mubr.f32.gmra.mxu0 %v270
    %v338 = vpop.f32.mrf.mxu0
    %v339 = vadd.f32 0.0, %v338
    %v340 = vpop.f32.mrf.mxu0
    %v341 = vadd.f32 0.0, %v340
    %342 = vdwg.mxu0
    %v345 = vrot.slane %v339, 6
    %v346 = vrot.slane %v341, 6
    %v349 = vadd.f32 %v267, %v345
    %v350 = vadd.f32 %v268, %v346
    %v351 = vxor.u32 %v349, 2147483648
    %v352 = vxor.u32 %v350, 2147483648
    %v353 = vmul.f32 %v351, 1.442695
    %v354 = vpow.pop %v353
    %v355 = vmul.f32 %v352, 1.442695
    %v356 = vpow.pop %v355
    %v357 = vadd.f32 %v354, 1.0
    %v358 = vadd.f32 %v356, 1.0
    %v359 = vrcp.pop %v357
    %v360 = vmul.f32 1.0, %v359
    %v361 = vrcp.pop %v358
    %v362 = vmul.f32 1.0, %v361
    %v363 = vtanh.pop %v350
    %v365 = vrot.slane %v260, 6
    %v367 = vmul.f32 %v360, %v365
    %369 = vrot.lane.b32.xlu0 %v363, 64
    %v370 = vpop.permute.xlu0 %369
    %v372 = vmul.f32 %v360, %v370
    %374 = vrot.lane.b32.xlu0 %v372, 64
    %v375 = vpop.permute.xlu0 %374
    %v377 = vadd.f32 %v367, %v375
    %v378 = vtanh.pop %v377
    %380 = vrot.lane.b32.xlu0 %v378, 64
    %v381 = vpop.permute.xlu0 %380
    %v383 = vmul.f32 %v362, %v381
    %v384 = vld [vmem:[#allocation2] sm:$0x30]
    %v385 = vld [vmem:[#allocation2 + $0x8] sm:$0x30]
    %v387 = vrot.slane %v383, 2
    %v388 = vsel %vm160, %v387, 0
    %390 = vmatprep.subr.mxu0 0.0
    %391 = vmatpush1.msra.mxu0 0.0
    %392 = vmatprep.subr.mxu0 0.0
    %393 = vmatpush1.msra.mxu0 0.0
    %394 = vmatprep.subr.mxu0 0.0
    %395 = vmatpush1.msra.mxu0 0.0
    %396 = vmatprep.subr.mxu0 0.0
    %397 = vmatpush1.msra.mxu0 0.0
    %398 = vmatprep.subr.mxu0 0.0
    %399 = vmatpush1.msra.mxu0 0.0
    %400 = vmatprep.subr.mxu0 0.0
    %401 = vmatpush1.msra.mxu0 0.0
    %402 = vmatprep.subr.mxu0 0.0
    %403 = vmatpush1.msra.mxu0 0.0
    %404 = vmatprep.subr.mxu0 0.0
    %405 = vmatpush1.msra.mxu0 0.0
    %406 = vmatprep.subr.mxu0 %v157
    %407 = vmatpush1.msra.mxu0 %v156
    %408 = vmatprep.subr.mxu0 %v155
    %409 = vmatpush1.msra.mxu0 %v154
    %410 = vmatprep.subr.mxu0 %v153
    %411 = vmatpush1.msra.mxu0 %v152
    %412 = vmatprep.subr.mxu0 %v151
    %413 = vmatpush1.msra.mxu0 %v150
    %414 = vmatprep.subr.mxu0 %v149
    %415 = vmatpush1.msra.mxu0 %v148
    %416 = vmatprep.subr.mxu0 %v147
    %417 = vmatpush1.msra.mxu0 %v146
    %418 = vmatprep.subr.mxu0 %v145
    %419 = vmatpush1.msra.mxu0 %v144
    %420 = vmatprep.subr.mxu0 %v143
    %421 = vmatpush1.msra.mxu0 %v142
    %422 = vmatprep.subr.mxu0 0.0
    %423 = vmatpush2.msra.mxu0 0.0
    %424 = vmatprep.subr.mxu0 0.0
    %425 = vmatpush2.msra.mxu0 0.0
    %426 = vmatprep.subr.mxu0 0.0
    %427 = vmatpush2.msra.mxu0 0.0
    %428 = vmatprep.subr.mxu0 0.0
    %429 = vmatpush2.msra.mxu0 0.0
    %430 = vmatprep.subr.mxu0 0.0
    %431 = vmatpush2.msra.mxu0 0.0
    %432 = vmatprep.subr.mxu0 0.0
    %433 = vmatpush2.msra.mxu0 0.0
    %434 = vmatprep.subr.mxu0 0.0
    %435 = vmatpush2.msra.mxu0 0.0
    %436 = vmatprep.subr.mxu0 0.0
    %437 = vmatpush2.msra.mxu0 0.0
    %438 = vmatprep.subr.mxu0 0.0
    %439 = vmatpush2.msra.mxu0 0.0
    %440 = vmatprep.subr.mxu0 0.0
    %441 = vmatpush2.msra.mxu0 0.0
    %442 = vmatprep.subr.mxu0 0.0
    %443 = vmatpush2.msra.mxu0 0.0
    %444 = vmatprep.subr.mxu0 0.0
    %445 = vmatpush2.msra.mxu0 0.0
    %446 = vmatprep.subr.mxu0 0.0
    %447 = vmatpush2.msra.mxu0 0.0
    %448 = vmatprep.subr.mxu0 0.0
    %449 = vmatpush2.msra.mxu0 0.0
    %450 = vmatprep.subr.mxu0 0.0
    %451 = vmatpush2.msra.mxu0 0.0
    %452 = vmatprep.subr.mxu0 0.0
    %453 = vmatpush2.msra.mxu0 0.0
    %454 = vmatprep.mubr.f32.mxu0 0.0
    %455 = vmatmul.mubr.f32.gmra.mxu0 %v388
    %v456 = vpop.f32.mrf.mxu0
    %v457 = vadd.f32 0.0, %v456
    %v458 = vpop.f32.mrf.mxu0
    %v459 = vadd.f32 0.0, %v458
    %460 = vdwg.mxu0
    %v463 = vrot.slane %v457, 4
    %v464 = vrot.slane %v459, 4
    %v467 = vadd.f32 %v384, %v463
    %v468 = vadd.f32 %v385, %v464
    %v469 = vxor.u32 %v467, 2147483648
    %v470 = vxor.u32 %v468, 2147483648
    %v471 = vmul.f32 %v469, 1.442695
    %v472 = vpow.pop %v471
    %v473 = vmul.f32 %v470, 1.442695
    %v474 = vpow.pop %v473
    %v475 = vadd.f32 %v472, 1.0
    %v476 = vadd.f32 %v474, 1.0
    %v477 = vrcp.pop %v475
    %v478 = vmul.f32 1.0, %v477
    %v479 = vrcp.pop %v476
    %v480 = vmul.f32 1.0, %v479
    %v481 = vtanh.pop %v468
    %v483 = vrot.slane %v377, 6
    %v485 = vmul.f32 %v478, %v483
    %487 = vrot.lane.b32.xlu0 %v481, 64
    %v488 = vpop.permute.xlu0 %487
    %v490 = vmul.f32 %v478, %v488
    %492 = vrot.lane.b32.xlu0 %v490, 64
    %v493 = vpop.permute.xlu0 %492
    %v495 = vadd.f32 %v485, %v493
    %v496 = vtanh.pop %v495
    %498 = vrot.lane.b32.xlu0 %v496, 64
    %v499 = vpop.permute.xlu0 %498
    %v501 = vmul.f32 %v480, %v499
    %v502 = vld [vmem:[#allocation2] sm:$0xc0]
    %v503 = vld [vmem:[#allocation2 + $0x8] sm:$0xc0]
    %v505 = vrot.slane %v501, 4
    %v506 = vsel %vm160, %v505, 0
    %508 = vmatprep.subr.mxu0 0.0
    %509 = vmatpush1.msra.mxu0 0.0
    %510 = vmatprep.subr.mxu0 0.0
    %511 = vmatpush1.msra.mxu0 0.0
    %512 = vmatprep.subr.mxu0 0.0
    %513 = vmatpush1.msra.mxu0 0.0
    %514 = vmatprep.subr.mxu0 0.0
    %515 = vmatpush1.msra.mxu0 0.0
    %516 = vmatprep.subr.mxu0 0.0
    %517 = vmatpush1.msra.mxu0 0.0
    %518 = vmatprep.subr.mxu0 0.0
    %519 = vmatpush1.msra.mxu0 0.0
    %520 = vmatprep.subr.mxu0 0.0
    %521 = vmatpush1.msra.mxu0 0.0
    %522 = vmatprep.subr.mxu0 0.0
    %523 = vmatpush1.msra.mxu0 0.0
    %524 = vmatprep.subr.mxu0 %v157
    %525 = vmatpush1.msra.mxu0 %v156
    %526 = vmatprep.subr.mxu0 %v155
    %527 = vmatpush1.msra.mxu0 %v154
    %528 = vmatprep.subr.mxu0 %v153
    %529 = vmatpush1.msra.mxu0 %v152
    %530 = vmatprep.subr.mxu0 %v151
    %531 = vmatpush1.msra.mxu0 %v150
    %532 = vmatprep.subr.mxu0 %v149
    %533 = vmatpush1.msra.mxu0 %v148
    %534 = vmatprep.subr.mxu0 %v147
    %535 = vmatpush1.msra.mxu0 %v146
    %536 = vmatprep.subr.mxu0 %v145
    %537 = vmatpush1.msra.mxu0 %v144
    %538 = vmatprep.subr.mxu0 %v143
    %539 = vmatpush1.msra.mxu0 %v142
    %540 = vmatprep.subr.mxu0 0.0
    %541 = vmatpush2.msra.mxu0 0.0
    %542 = vmatprep.subr.mxu0 0.0
    %543 = vmatpush2.msra.mxu0 0.0
    %544 = vmatprep.subr.mxu0 0.0
    %545 = vmatpush2.msra.mxu0 0.0
    %546 = vmatprep.subr.mxu0 0.0
    %547 = vmatpush2.msra.mxu0 0.0
    %548 = vmatprep.subr.mxu0 0.0
    %549 = vmatpush2.msra.mxu0 0.0
    %550 = vmatprep.subr.mxu0 0.0
    %551 = vmatpush2.msra.mxu0 0.0
    %552 = vmatprep.subr.mxu0 0.0
    %553 = vmatpush2.msra.mxu0 0.0
    %554 = vmatprep.subr.mxu0 0.0
    %555 = vmatpush2.msra.mxu0 0.0
    %556 = vmatprep.subr.mxu0 0.0
    %557 = vmatpush2.msra.mxu0 0.0
    %558 = vmatprep.subr.mxu0 0.0
    %559 = vmatpush2.msra.mxu0 0.0
    %560 = vmatprep.subr.mxu0 0.0
    %561 = vmatpush2.msra.mxu0 0.0
    %562 = vmatprep.subr.mxu0 0.0
    %563 = vmatpush2.msra.mxu0 0.0
    %564 = vmatprep.subr.mxu0 0.0
    %565 = vmatpush2.msra.mxu0 0.0
    %566 = vmatprep.subr.mxu0 0.0
    %567 = vmatpush2.msra.mxu0 0.0
    %568 = vmatprep.subr.mxu0 0.0
    %569 = vmatpush2.msra.mxu0 0.0
    %570 = vmatprep.subr.mxu0 0.0
    %571 = vmatpush2.msra.mxu0 0.0
    %572 = vmatprep.mubr.f32.mxu0 0.0
    %573 = vmatmul.mubr.f32.gmra.mxu0 %v506
    %v574 = vpop.f32.mrf.mxu0
    %v575 = vadd.f32 0.0, %v574
    %v576 = vpop.f32.mrf.mxu0
    %v577 = vadd.f32 0.0, %v576
    %578 = vdwg.mxu0
    %v581 = vrot.slane %v575, 2
    %v582 = vrot.slane %v577, 2
    %v585 = vadd.f32 %v502, %v581
    %v586 = vadd.f32 %v503, %v582
    %v587 = vxor.u32 %v585, 2147483648
    %v588 = vxor.u32 %v586, 2147483648
    %v589 = vmul.f32 %v587, 1.442695
    %v590 = vpow.pop %v589
    %v591 = vmul.f32 %v588, 1.442695
    %v592 = vpow.pop %v591
    %v593 = vadd.f32 %v590, 1.0
    %v594 = vadd.f32 %v592, 1.0
    %v595 = vrcp.pop %v593
    %v596 = vmul.f32 1.0, %v595
    %v597 = vrcp.pop %v594
    %v598 = vmul.f32 1.0, %v597
    %v599 = vtanh.pop %v586
    %v601 = vrot.slane %v495, 6
    %v603 = vmul.f32 %v596, %v601
    %605 = vrot.lane.b32.xlu0 %v599, 64
    %v606 = vpop.permute.xlu0 %605
    %v608 = vmul.f32 %v596, %v606
    %610 = vrot.lane.b32.xlu0 %v608, 64
    %v611 = vpop.permute.xlu0 %610
    %v613 = vadd.f32 %v603, %v611
    %v614 = vtanh.pop %v613
    %616 = vrot.lane.b32.xlu0 %v614, 64
    %v617 = vpop.permute.xlu0 %616
    %v619 = vmul.f32 %v598, %v617
    %v620 = vld [vmem:[#allocation2 + $0x10] sm:$0x3]
    %v621 = vld [vmem:[#allocation2 + $0x18] sm:$0x3]
    %v623 = vrot.slane %v619, 6
    %v624 = vsel %vm160, %v623, 0
    %626 = vmatprep.subr.mxu0 0.0
    %627 = vmatpush1.msra.mxu0 0.0
    %628 = vmatprep.subr.mxu0 0.0
    %629 = vmatpush1.msra.mxu0 0.0
    %630 = vmatprep.subr.mxu0 0.0
    %631 = vmatpush1.msra.mxu0 0.0
    %632 = vmatprep.subr.mxu0 0.0
    %633 = vmatpush1.msra.mxu0 0.0
    %634 = vmatprep.subr.mxu0 0.0
    %635 = vmatpush1.msra.mxu0 0.0
    %636 = vmatprep.subr.mxu0 0.0
    %637 = vmatpush1.msra.mxu0 0.0
    %638 = vmatprep.subr.mxu0 0.0
    %639 = vmatpush1.msra.mxu0 0.0
    %640 = vmatprep.subr.mxu0 0.0
    %641 = vmatpush1.msra.mxu0 0.0
    %642 = vmatprep.subr.mxu0 %v157
    %643 = vmatpush1.msra.mxu0 %v156
    %644 = vmatprep.subr.mxu0 %v155
    %645 = vmatpush1.msra.mxu0 %v154
    %646 = vmatprep.subr.mxu0 %v153
    %647 = vmatpush1.msra.mxu0 %v152
    %648 = vmatprep.subr.mxu0 %v151
    %649 = vmatpush1.msra.mxu0 %v150
    %650 = vmatprep.subr.mxu0 %v149
    %651 = vmatpush1.msra.mxu0 %v148
    %652 = vmatprep.subr.mxu0 %v147
    %653 = vmatpush1.msra.mxu0 %v146
    %654 = vmatprep.subr.mxu0 %v145
    %655 = vmatpush1.msra.mxu0 %v144
    %656 = vmatprep.subr.mxu0 %v143
    %657 = vmatpush1.msra.mxu0 %v142
    %658 = vmatprep.subr.mxu0 0.0
    %659 = vmatpush2.msra.mxu0 0.0
    %660 = vmatprep.subr.mxu0 0.0
    %661 = vmatpush2.msra.mxu0 0.0
    %662 = vmatprep.subr.mxu0 0.0
    %663 = vmatpush2.msra.mxu0 0.0
    %664 = vmatprep.subr.mxu0 0.0
    %665 = vmatpush2.msra.mxu0 0.0
    %666 = vmatprep.subr.mxu0 0.0
    %667 = vmatpush2.msra.mxu0 0.0
    %668 = vmatprep.subr.mxu0 0.0
    %669 = vmatpush2.msra.mxu0 0.0
    %670 = vmatprep.subr.mxu0 0.0
    %671 = vmatpush2.msra.mxu0 0.0
    %672 = vmatprep.subr.mxu0 0.0
    %673 = vmatpush2.msra.mxu0 0.0
    %674 = vmatprep.subr.mxu0 0.0
    %675 = vmatpush2.msra.mxu0 0.0
    %676 = vmatprep.subr.mxu0 0.0
    %677 = vmatpush2.msra.mxu0 0.0
    %678 = vmatprep.subr.mxu0 0.0
    %679 = vmatpush2.msra.mxu0 0.0
    %680 = vmatprep.subr.mxu0 0.0
    %681 = vmatpush2.msra.mxu0 0.0
    %682 = vmatprep.subr.mxu0 0.0
    %683 = vmatpush2.msra.mxu0 0.0
    %684 = vmatprep.subr.mxu0 0.0
    %685 = vmatpush2.msra.mxu0 0.0
    %686 = vmatprep.subr.mxu0 0.0
    %687 = vmatpush2.msra.mxu0 0.0
    %688 = vmatprep.subr.mxu0 0.0
    %689 = vmatpush2.msra.mxu0 0.0
    %690 = vmatprep.mubr.f32.mxu0 0.0
    %691 = vmatmul.mubr.f32.gmra.mxu0 %v624
    %v692 = vpop.f32.mrf.mxu0
    %v693 = vadd.f32 0.0, %v692
    %v694 = vpop.f32.mrf.mxu0
    %v695 = vadd.f32 0.0, %v694
    %696 = vdwg.mxu0
    %v697 = vadd.f32 %v620, %v693
    %v698 = vadd.f32 %v621, %v695
    %v699 = vxor.u32 %v697, 2147483648
    %v700 = vxor.u32 %v698, 2147483648
    %v701 = vmul.f32 %v699, 1.442695
    %v702 = vpow.pop %v701
    %v703 = vmul.f32 %v700, 1.442695
    %v704 = vpow.pop %v703
    %v705 = vadd.f32 %v702, 1.0
    %v706 = vadd.f32 %v704, 1.0
    %v707 = vrcp.pop %v705
    %v708 = vmul.f32 1.0, %v707
    %v709 = vrcp.pop %v706
    %v710 = vmul.f32 1.0, %v709
    %v711 = vtanh.pop %v698
    %v713 = vrot.slane %v613, 6
    %v715 = vmul.f32 %v708, %v713
    %717 = vrot.lane.b32.xlu0 %v711, 64
    %v718 = vpop.permute.xlu0 %717
    %v720 = vmul.f32 %v708, %v718
    %722 = vrot.lane.b32.xlu0 %v720, 64
    %v723 = vpop.permute.xlu0 %722
    %v725 = vadd.f32 %v715, %v723
    %v726 = vtanh.pop %v725
    %728 = vrot.lane.b32.xlu0 %v726, 64
    %v729 = vpop.permute.xlu0 %728
    %v731 = vmul.f32 %v710, %v729
    %v732 = vld [vmem:[#allocation2 + $0x10] sm:$0xc]
    %v733 = vld [vmem:[#allocation2 + $0x18] sm:$0xc]
    %v735 = vsel %vm160, %v731, 0
    %737 = vmatprep.subr.mxu0 0.0
    %738 = vmatpush1.msra.mxu0 0.0
    %739 = vmatprep.subr.mxu0 0.0
    %740 = vmatpush1.msra.mxu0 0.0
    %741 = vmatprep.subr.mxu0 0.0
    %742 = vmatpush1.msra.mxu0 0.0
    %743 = vmatprep.subr.mxu0 0.0
    %744 = vmatpush1.msra.mxu0 0.0
    %745 = vmatprep.subr.mxu0 0.0
    %746 = vmatpush1.msra.mxu0 0.0
    %747 = vmatprep.subr.mxu0 0.0
    %748 = vmatpush1.msra.mxu0 0.0
    %749 = vmatprep.subr.mxu0 0.0
    %750 = vmatpush1.msra.mxu0 0.0
    %751 = vmatprep.subr.mxu0 0.0
    %752 = vmatpush1.msra.mxu0 0.0
    %753 = vmatprep.subr.mxu0 %v157
    %754 = vmatpush1.msra.mxu0 %v156
    %755 = vmatprep.subr.mxu0 %v155
    %756 = vmatpush1.msra.mxu0 %v154
    %757 = vmatprep.subr.mxu0 %v153
    %758 = vmatpush1.msra.mxu0 %v152
    %759 = vmatprep.subr.mxu0 %v151
    %760 = vmatpush1.msra.mxu0 %v150
    %761 = vmatprep.subr.mxu0 %v149
    %762 = vmatpush1.msra.mxu0 %v148
    %763 = vmatprep.subr.mxu0 %v147
    %764 = vmatpush1.msra.mxu0 %v146
    %765 = vmatprep.subr.mxu0 %v145
    %766 = vmatpush1.msra.mxu0 %v144
    %767 = vmatprep.subr.mxu0 %v143
    %768 = vmatpush1.msra.mxu0 %v142
    %769 = vmatprep.subr.mxu0 0.0
    %770 = vmatpush2.msra.mxu0 0.0
    %771 = vmatprep.subr.mxu0 0.0
    %772 = vmatpush2.msra.mxu0 0.0
    %773 = vmatprep.subr.mxu0 0.0
    %774 = vmatpush2.msra.mxu0 0.0
    %775 = vmatprep.subr.mxu0 0.0
    %776 = vmatpush2.msra.mxu0 0.0
    %777 = vmatprep.subr.mxu0 0.0
    %778 = vmatpush2.msra.mxu0 0.0
    %779 = vmatprep.subr.mxu0 0.0
    %780 = vmatpush2.msra.mxu0 0.0
    %781 = vmatprep.subr.mxu0 0.0
    %782 = vmatpush2.msra.mxu0 0.0
    %783 = vmatprep.subr.mxu0 0.0
    %784 = vmatpush2.msra.mxu0 0.0
    %785 = vmatprep.subr.mxu0 0.0
    %786 = vmatpush2.msra.mxu0 0.0
    %787 = vmatprep.subr.mxu0 0.0
    %788 = vmatpush2.msra.mxu0 0.0
    %789 = vmatprep.subr.mxu0 0.0
    %790 = vmatpush2.msra.mxu0 0.0
    %791 = vmatprep.subr.mxu0 0.0
    %792 = vmatpush2.msra.mxu0 0.0
    %793 = vmatprep.subr.mxu0 0.0
    %794 = vmatpush2.msra.mxu0 0.0
    %795 = vmatprep.subr.mxu0 0.0
    %796 = vmatpush2.msra.mxu0 0.0
    %797 = vmatprep.subr.mxu0 0.0
    %798 = vmatpush2.msra.mxu0 0.0
    %799 = vmatprep.subr.mxu0 0.0
    %800 = vmatpush2.msra.mxu0 0.0
    %801 = vmatprep.mubr.f32.mxu0 0.0
    %802 = vmatmul.mubr.f32.gmra.mxu0 %v735
    %v803 = vpop.f32.mrf.mxu0
    %v804 = vadd.f32 0.0, %v803
    %v805 = vpop.f32.mrf.mxu0
    %v806 = vadd.f32 0.0, %v805
    %807 = vdwg.mxu0
    %v810 = vrot.slane %v804, 6
    %v811 = vrot.slane %v806, 6
    %v814 = vadd.f32 %v732, %v810
    %v815 = vadd.f32 %v733, %v811
    %v816 = vxor.u32 %v814, 2147483648
    %v817 = vxor.u32 %v815, 2147483648
    %v818 = vmul.f32 %v816, 1.442695
    %v819 = vpow.pop %v818
    %v820 = vmul.f32 %v817, 1.442695
    %v821 = vpow.pop %v820
    %v822 = vadd.f32 %v819, 1.0
    %v823 = vadd.f32 %v821, 1.0
    %v824 = vrcp.pop %v822
    %v825 = vmul.f32 1.0, %v824
    %v826 = vrcp.pop %v823
    %v827 = vmul.f32 1.0, %v826
    %v828 = vtanh.pop %v815
    %v830 = vrot.slane %v725, 6
    %v832 = vmul.f32 %v825, %v830
    %834 = vrot.lane.b32.xlu0 %v828, 64
    %v835 = vpop.permute.xlu0 %834
    %v837 = vmul.f32 %v825, %v835
    %839 = vrot.lane.b32.xlu0 %v837, 64
    %v840 = vpop.permute.xlu0 %839
    %v842 = vadd.f32 %v832, %v840
    %v843 = vtanh.pop %v842
    %845 = vrot.lane.b32.xlu0 %v843, 64
    %v846 = vpop.permute.xlu0 %845
    %v848 = vmul.f32 %v827, %v846
    %v849 = vld [vmem:[#allocation2 + $0x10] sm:$0x30]
    %v850 = vld [vmem:[#allocation2 + $0x18] sm:$0x30]
    %v852 = vrot.slane %v848, 2
    %v853 = vsel %vm160, %v852, 0
    %855 = vmatprep.subr.mxu0 0.0
    %856 = vmatpush1.msra.mxu0 0.0
    %857 = vmatprep.subr.mxu0 0.0
    %858 = vmatpush1.msra.mxu0 0.0
    %859 = vmatprep.subr.mxu0 0.0
    %860 = vmatpush1.msra.mxu0 0.0
    %861 = vmatprep.subr.mxu0 0.0
    %862 = vmatpush1.msra.mxu0 0.0
    %863 = vmatprep.subr.mxu0 0.0
    %864 = vmatpush1.msra.mxu0 0.0
    %865 = vmatprep.subr.mxu0 0.0
    %866 = vmatpush1.msra.mxu0 0.0
    %867 = vmatprep.subr.mxu0 0.0
    %868 = vmatpush1.msra.mxu0 0.0
    %869 = vmatprep.subr.mxu0 0.0
    %870 = vmatpush1.msra.mxu0 0.0
    %871 = vmatprep.subr.mxu0 %v157
    %872 = vmatpush1.msra.mxu0 %v156
    %873 = vmatprep.subr.mxu0 %v155
    %874 = vmatpush1.msra.mxu0 %v154
    %875 = vmatprep.subr.mxu0 %v153
    %876 = vmatpush1.msra.mxu0 %v152
    %877 = vmatprep.subr.mxu0 %v151
    %878 = vmatpush1.msra.mxu0 %v150
    %879 = vmatprep.subr.mxu0 %v149
    %880 = vmatpush1.msra.mxu0 %v148
    %881 = vmatprep.subr.mxu0 %v147
    %882 = vmatpush1.msra.mxu0 %v146
    %883 = vmatprep.subr.mxu0 %v145
    %884 = vmatpush1.msra.mxu0 %v144
    %885 = vmatprep.subr.mxu0 %v143
    %886 = vmatpush1.msra.mxu0 %v142
    %887 = vmatprep.subr.mxu0 0.0
    %888 = vmatpush2.msra.mxu0 0.0
    %889 = vmatprep.subr.mxu0 0.0
    %890 = vmatpush2.msra.mxu0 0.0
    %891 = vmatprep.subr.mxu0 0.0
    %892 = vmatpush2.msra.mxu0 0.0
    %893 = vmatprep.subr.mxu0 0.0
    %894 = vmatpush2.msra.mxu0 0.0
    %895 = vmatprep.subr.mxu0 0.0
    %896 = vmatpush2.msra.mxu0 0.0
    %897 = vmatprep.subr.mxu0 0.0
    %898 = vmatpush2.msra.mxu0 0.0
    %899 = vmatprep.subr.mxu0 0.0
    %900 = vmatpush2.msra.mxu0 0.0
    %901 = vmatprep.subr.mxu0 0.0
    %902 = vmatpush2.msra.mxu0 0.0
    %903 = vmatprep.subr.mxu0 0.0
    %904 = vmatpush2.msra.mxu0 0.0
    %905 = vmatprep.subr.mxu0 0.0
    %906 = vmatpush2.msra.mxu0 0.0
    %907 = vmatprep.subr.mxu0 0.0
    %908 = vmatpush2.msra.mxu0 0.0
    %909 = vmatprep.subr.mxu0 0.0
    %910 = vmatpush2.msra.mxu0 0.0
    %911 = vmatprep.subr.mxu0 0.0
    %912 = vmatpush2.msra.mxu0 0.0
    %913 = vmatprep.subr.mxu0 0.0
    %914 = vmatpush2.msra.mxu0 0.0
    %915 = vmatprep.subr.mxu0 0.0
    %916 = vmatpush2.msra.mxu0 0.0
    %917 = vmatprep.subr.mxu0 0.0
    %918 = vmatpush2.msra.mxu0 0.0
    %919 = vmatprep.mubr.f32.mxu0 0.0
    %920 = vmatmul.mubr.f32.gmra.mxu0 %v853
    %v921 = vpop.f32.mrf.mxu0
    %v922 = vadd.f32 0.0, %v921
    %v923 = vpop.f32.mrf.mxu0
    %v924 = vadd.f32 0.0, %v923
    %925 = vdwg.mxu0
    %v928 = vrot.slane %v922, 4
    %v929 = vrot.slane %v924, 4
    %v932 = vadd.f32 %v849, %v928
    %v933 = vadd.f32 %v850, %v929
    %v934 = vxor.u32 %v932, 2147483648
    %v935 = vxor.u32 %v933, 2147483648
    %v936 = vmul.f32 %v934, 1.442695
    %v937 = vpow.pop %v936
    %v938 = vmul.f32 %v935, 1.442695
    %v939 = vpow.pop %v938
    %v940 = vadd.f32 %v937, 1.0
    %v941 = vadd.f32 %v939, 1.0
    %v942 = vrcp.pop %v940
    %v943 = vmul.f32 1.0, %v942
    %v944 = vrcp.pop %v941
    %v945 = vmul.f32 1.0, %v944
    %v946 = vtanh.pop %v933
    %v948 = vrot.slane %v842, 6
    %v950 = vmul.f32 %v943, %v948
    %952 = vrot.lane.b32.xlu0 %v946, 64
    %v953 = vpop.permute.xlu0 %952
    %v955 = vmul.f32 %v943, %v953
    %957 = vrot.lane.b32.xlu0 %v955, 64
    %v958 = vpop.permute.xlu0 %957
    %v960 = vadd.f32 %v950, %v958
    %v961 = vtanh.pop %v960
    %963 = vrot.lane.b32.xlu0 %v961, 64
    %v964 = vpop.permute.xlu0 %963
    %v966 = vmul.f32 %v945, %v964
    %v967 = vld [vmem:[#allocation2 + $0x10] sm:$0xc0]
    %v968 = vld [vmem:[#allocation2 + $0x18] sm:$0xc0]
    %v970 = vrot.slane %v966, 4
    %v971 = vsel %vm160, %v970, 0
    %973 = vmatprep.subr.mxu0 0.0
    %974 = vmatpush1.msra.mxu0 0.0
    %975 = vmatprep.subr.mxu0 0.0
    %976 = vmatpush1.msra.mxu0 0.0
    %977 = vmatprep.subr.mxu0 0.0
    %978 = vmatpush1.msra.mxu0 0.0
    %979 = vmatprep.subr.mxu0 0.0
    %980 = vmatpush1.msra.mxu0 0.0
    %981 = vmatprep.subr.mxu0 0.0
    %982 = vmatpush1.msra.mxu0 0.0
    %983 = vmatprep.subr.mxu0 0.0
    %984 = vmatpush1.msra.mxu0 0.0
    %985 = vmatprep.subr.mxu0 0.0
    %986 = vmatpush1.msra.mxu0 0.0
    %987 = vmatprep.subr.mxu0 0.0
    %988 = vmatpush1.msra.mxu0 0.0
    %989 = vmatprep.subr.mxu0 %v157
    %990 = vmatpush1.msra.mxu0 %v156
    %991 = vmatprep.subr.mxu0 %v155
    %992 = vmatpush1.msra.mxu0 %v154
    %993 = vmatprep.subr.mxu0 %v153
    %994 = vmatpush1.msra.mxu0 %v152
    %995 = vmatprep.subr.mxu0 %v151
    %996 = vmatpush1.msra.mxu0 %v150
    %997 = vmatprep.subr.mxu0 %v149
    %998 = vmatpush1.msra.mxu0 %v148
    %999 = vmatprep.subr.mxu0 %v147
    %1000 = vmatpush1.msra.mxu0 %v146
    %1001 = vmatprep.subr.mxu0 %v145
    %1002 = vmatpush1.msra.mxu0 %v144
    %1003 = vmatprep.subr.mxu0 %v143
    %1004 = vmatpush1.msra.mxu0 %v142
    %1005 = vmatprep.subr.mxu0 0.0
    %1006 = vmatpush2.msra.mxu0 0.0
    %1007 = vmatprep.subr.mxu0 0.0
    %1008 = vmatpush2.msra.mxu0 0.0
    %1009 = vmatprep.subr.mxu0 0.0
    %1010 = vmatpush2.msra.mxu0 0.0
    %1011 = vmatprep.subr.mxu0 0.0
    %1012 = vmatpush2.msra.mxu0 0.0
    %1013 = vmatprep.subr.mxu0 0.0
    %1014 = vmatpush2.msra.mxu0 0.0
    %1015 = vmatprep.subr.mxu0 0.0
    %1016 = vmatpush2.msra.mxu0 0.0
    %1017 = vmatprep.subr.mxu0 0.0
    %1018 = vmatpush2.msra.mxu0 0.0
    %1019 = vmatprep.subr.mxu0 0.0
    %1020 = vmatpush2.msra.mxu0 0.0
    %1021 = vmatprep.subr.mxu0 0.0
    %1022 = vmatpush2.msra.mxu0 0.0
    %1023 = vmatprep.subr.mxu0 0.0
    %1024 = vmatpush2.msra.mxu0 0.0
    %1025 = vmatprep.subr.mxu0 0.0
    %1026 = vmatpush2.msra.mxu0 0.0
    %1027 = vmatprep.subr.mxu0 0.0
    %1028 = vmatpush2.msra.mxu0 0.0
    %1029 = vmatprep.subr.mxu0 0.0
    %1030 = vmatpush2.msra.mxu0 0.0
    %1031 = vmatprep.subr.mxu0 0.0
    %1032 = vmatpush2.msra.mxu0 0.0
    %1033 = vmatprep.subr.mxu0 0.0
    %1034 = vmatpush2.msra.mxu0 0.0
    %1035 = vmatprep.subr.mxu0 0.0
    %1036 = vmatpush2.msra.mxu0 0.0
    %1037 = vmatprep.mubr.f32.mxu0 0.0
    %1038 = vmatmul.mubr.f32.gmra.mxu0 %v971
    %v1039 = vpop.f32.mrf.mxu0
    %v1040 = vadd.f32 0.0, %v1039
    %v1041 = vpop.f32.mrf.mxu0
    %v1042 = vadd.f32 0.0, %v1041
    %1043 = vdwg.mxu0
    %v1046 = vrot.slane %v1040, 2
    %v1047 = vrot.slane %v1042, 2
    %v1050 = vadd.f32 %v967, %v1046
    %v1051 = vadd.f32 %v968, %v1047
    %v1052 = vxor.u32 %v1050, 2147483648
    %v1053 = vxor.u32 %v1051, 2147483648
    %v1054 = vmul.f32 %v1052, 1.442695
    %v1055 = vpow.pop %v1054
    %v1056 = vmul.f32 %v1053, 1.442695
    %v1057 = vpow.pop %v1056
    %v1058 = vadd.f32 %v1055, 1.0
    %v1059 = vadd.f32 %v1057, 1.0
    %v1060 = vrcp.pop %v1058
    %v1061 = vmul.f32 1.0, %v1060
    %v1062 = vrcp.pop %v1059
    %v1063 = vmul.f32 1.0, %v1062
    %v1064 = vtanh.pop %v1051
    %v1066 = vrot.slane %v960, 6
    %v1068 = vmul.f32 %v1061, %v1066
    %1070 = vrot.lane.b32.xlu0 %v1064, 64
    %v1071 = vpop.permute.xlu0 %1070
    %v1073 = vmul.f32 %v1061, %v1071
    %1075 = vrot.lane.b32.xlu0 %v1073, 64
    %v1076 = vpop.permute.xlu0 %1075
    %v1078 = vadd.f32 %v1068, %v1076
    %v1079 = vtanh.pop %v1078
    %1081 = vrot.lane.b32.xlu0 %v1079, 64
    %v1082 = vpop.permute.xlu0 %1081
    %v1084 = vmul.f32 %v1063, %v1082
    %v1085 = vld [vmem:[%s4] sm:$0xff]
    %v1086 = vld [vmem:[%s4 + $0x8] sm:$0xff]
    %v1087 = vld [vmem:[%s4 + $0x10] sm:$0xff]
    %v1088 = vld [vmem:[%s4 + $0x18] sm:$0xff]
    %v1089 = vld [vmem:[%s4 + $0x20] sm:$0xff]
    %v1090 = vld [vmem:[%s4 + $0x28] sm:$0xff]
    %v1091 = vld [vmem:[%s4 + $0x30] sm:$0xff]
    %v1092 = vld [vmem:[%s4 + $0x38] sm:$0xff]
    %v1093 = vld [vmem:[%s5] sm:$0x1]
    %v1095 = vlaneseq
    %v1096 = vshrl.u32 %v1095, 7
    %v1097 = vsub.s32 0, %v1096
    %v1098 = vrot.slane %v1093, %v1097
    %v1101 = vrot.slane %v1084, 6
    %v1102 = vsel %vm160, %v1101, 0
    %1104 = vmatprep.subr.mxu0 0.0
    %1105 = vmatpush1.msra.mxu0 0.0
    %1106 = vmatprep.subr.mxu0 0.0
    %1107 = vmatpush1.msra.mxu0 0.0
    %1108 = vmatprep.subr.mxu0 0.0
    %1109 = vmatpush1.msra.mxu0 0.0
    %1110 = vmatprep.subr.mxu0 0.0
    %1111 = vmatpush1.msra.mxu0 0.0
    %1112 = vmatprep.subr.mxu0 0.0
    %1113 = vmatpush1.msra.mxu0 0.0
    %1114 = vmatprep.subr.mxu0 0.0
    %1115 = vmatpush1.msra.mxu0 0.0
    %1116 = vmatprep.subr.mxu0 0.0
    %1117 = vmatpush1.msra.mxu0 0.0
    %1118 = vmatprep.subr.mxu0 0.0
    %1119 = vmatpush1.msra.mxu0 0.0
    %1120 = vmatprep.subr.mxu0 0.0
    %1121 = vmatpush1.msra.mxu0 %v1092
    %1122 = vmatprep.subr.mxu0 0.0
    %1123 = vmatpush1.msra.mxu0 %v1091
    %1124 = vmatprep.subr.mxu0 0.0
    %1125 = vmatpush1.msra.mxu0 %v1090
    %1126 = vmatprep.subr.mxu0 0.0
    %1127 = vmatpush1.msra.mxu0 %v1089
    %1128 = vmatprep.subr.mxu0 0.0
    %1129 = vmatpush1.msra.mxu0 %v1088
    %1130 = vmatprep.subr.mxu0 0.0
    %1131 = vmatpush1.msra.mxu0 %v1087
    %1132 = vmatprep.subr.mxu0 0.0
    %1133 = vmatpush1.msra.mxu0 %v1086
    %1134 = vmatprep.subr.mxu0 0.0
    %1135 = vmatpush1.msra.mxu0 %v1085
    %1136 = vmatprep.subr.mxu0 0.0
    %1137 = vmatpush2.msra.mxu0 0.0
    %1138 = vmatprep.subr.mxu0 0.0
    %1139 = vmatpush2.msra.mxu0 0.0
    %1140 = vmatprep.subr.mxu0 0.0
    %1141 = vmatpush2.msra.mxu0 0.0
    %1142 = vmatprep.subr.mxu0 0.0
    %1143 = vmatpush2.msra.mxu0 0.0
    %1144 = vmatprep.subr.mxu0 0.0
    %1145 = vmatpush2.msra.mxu0 0.0
    %1146 = vmatprep.subr.mxu0 0.0
    %1147 = vmatpush2.msra.mxu0 0.0
    %1148 = vmatprep.subr.mxu0 0.0
    %1149 = vmatpush2.msra.mxu0 0.0
    %1150 = vmatprep.subr.mxu0 0.0
    %1151 = vmatpush2.msra.mxu0 0.0
    %1152 = vmatprep.subr.mxu0 0.0
    %1153 = vmatpush2.msra.mxu0 0.0
    %1154 = vmatprep.subr.mxu0 0.0
    %1155 = vmatpush2.msra.mxu0 0.0
    %1156 = vmatprep.subr.mxu0 0.0
    %1157 = vmatpush2.msra.mxu0 0.0
    %1158 = vmatprep.subr.mxu0 0.0
    %1159 = vmatpush2.msra.mxu0 0.0
    %1160 = vmatprep.subr.mxu0 0.0
    %1161 = vmatpush2.msra.mxu0 0.0
    %1162 = vmatprep.subr.mxu0 0.0
    %1163 = vmatpush2.msra.mxu0 0.0
    %1164 = vmatprep.subr.mxu0 0.0
    %1165 = vmatpush2.msra.mxu0 0.0
    %1166 = vmatprep.subr.mxu0 0.0
    %1167 = vmatpush2.msra.mxu0 0.0
    %1168 = vmatprep.mubr.f32.mxu0 0.0
    %1169 = vmatmul.mubr.f32.gmra.mxu0 %v1102
    %v1170 = vpop.f32.mrf.mxu0
    %v1171 = vadd.f32 %v1098, %v1170
    %v1172 = vpop.f32.mrf.mxu0
    %1173 = vdwg.mxu0
    %vm1174 = vcmask 58368
    %1175 = vst.msk [vmem:[#allocation6] sm:$0x3] %vm1174, %v1171
    // Predicated region
    $region30: #{tpu_custom_call.1} parent=1 // pred_check
      _
    $region31: #{tpu_custom_call.1} parent=1 // pred_check_branch
      %1177 = sbr.rel (0) target = $region33
    $region32: #{tpu_custom_call.1} parent=1 // pred_region
      %s1179 = ssub.s32 32, 32
      %1180 = vsyncadd [#allocation5], %s1179
      %s1182 = sshll.u32 [#allocation6], 4
      %s1183 = int_to_ptr.vmem [resolvable:$true] %s1182
      %1185 = dma.vmem_to_hbm [thread:$0]  %s1183, 32, %s6, [#allocation5]
    $region33: #{tpu_custom_call.1} parent=1 // pred_fallthru
      _
    // Predicated region
    $region34: #{tpu_custom_call.1} parent=1 // pred_check
      _
    $region35: #{tpu_custom_call.1} parent=1 // pred_check_branch
      %1187 = sbr.rel (0) target = $region37
    $region36: #{tpu_custom_call.1} parent=1 // pred_region
      %1188 = dma.done [#allocation5], 32
    $region37: #{tpu_custom_call.1} parent=1 // pred_fallthru
      _
    %1189 = vsyncpa [#allocation4], 1
    %1190 = vsyncpa [#allocation5], 1

</llo_original>
